<compile_context>
chip_gen: v7x
topology: tpu7x:2x2x1
jax: 0.10.0
libtpu: 0.0.40
codegen_flags: <defaults>
</compile_context>

<pallas_src>
import math

import jax
import jax.numpy as jnp
from jax.experimental import pallas as pl
from jax.experimental.pallas import tpu as pltpu


# ----------------------------------------------------------------------------
# Kernels
# ----------------------------------------------------------------------------
def _hidden_layer_kernel_f32(x_ref, w_ref, b_ref, o_ref):
    """f32 output: accumulate directly into the VMEM-resident output tile."""
    k = pl.program_id(2)

    @pl.when(k == 0)
    def _init():
        o_ref[...] = jnp.zeros_like(o_ref)

    o_ref[...] += jnp.dot(
        x_ref[...], w_ref[...], preferred_element_type=jnp.float32
    )

    @pl.when(k == pl.num_programs(2) - 1)
    def _finalize():
        o_ref[...] = jnp.maximum(o_ref[...] + b_ref[...].astype(jnp.float32), 0.0)


def _hidden_layer_kernel_scratch(x_ref, w_ref, b_ref, o_ref, acc_ref):
    """Narrow output dtypes: f32 VMEM accumulator, cast once at the end."""
    k = pl.program_id(2)

    @pl.when(k == 0)
    def _init():
        acc_ref[...] = jnp.zeros_like(acc_ref)

    acc_ref[...] += jnp.dot(
        x_ref[...], w_ref[...], preferred_element_type=jnp.float32
    )

    @pl.when(k == pl.num_programs(2) - 1)
    def _finalize():
        y = acc_ref[...] + b_ref[...].astype(jnp.float32)
        o_ref[...] = jnp.maximum(y, 0.0).astype(o_ref.dtype)


# ----------------------------------------------------------------------------
# Tiling helpers
# ----------------------------------------------------------------------------
def _round_up(x, m):
    return ((x + m - 1) // m) * m


def _sublane(dtype):
    """Sublane granularity for dense vreg packing: f32→8, bf16→16, int8/fp8→32."""
    return {4: 8, 2: 16, 1: 32}.get(jnp.dtype(dtype).itemsize, 8)


def _pick_tile(dim, preferred, granularity, max_waste=0.125):
    """Largest legal tile (multiple of `granularity`, <= `preferred`) whose
    padding overhead is acceptable; the dim is then padded to a multiple."""
    dim_r = _round_up(dim, granularity)
    if dim_r <= preferred:
        return dim_r                      # single (padded) tile
    t = preferred
    while t > granularity:
        padded = _round_up(dim, t)
        if dim % t == 0 or (padded - dim) / dim <= max_waste:
            return t
        t //= 2
    return granularity


def _vmem_cap_bytes():
    try:
        return int(pltpu.get_tpu_info().vmem_capacity_bytes)
    except Exception:
        return 64 << 20                   # safe for all generations (v7x phys)


# ----------------------------------------------------------------------------
# Forward
# ----------------------------------------------------------------------------
def hidden_layer_forward(x, weight_t, bias, *, tm=512, tn=512, tk=1024):
    """relu(x @ weight_t + bias), weight_t already transposed to (K, N)."""
    orig_shape = x.shape
    K = orig_shape[-1]
    x2 = x.reshape(-1, K)                 # support arbitrary leading dims
    M = x2.shape[0]
    N = weight_t.shape[1]
    out_dtype = x.dtype

    # --- tile selection (dtype-aware sublane granularity on tm) -------------
    tm = _pick_tile(M, tm, max(_sublane(x2.dtype), _sublane(out_dtype)))
    tn = _pick_tile(N, tn, 128)
    tk = _pick_tile(K, tk, 128)

    Mp, Np, Kp = _round_up(M, tm), _round_up(N, tn), _round_up(K, tk)

    # Guarantee >=2 tiles along a parallel axis so both v7x TCs get work.
    if Mp // tm == 1 and Np // tn == 1 and tn >= 256:
        tn //= 2                          # Np is still a multiple of tn

    grid = (Mp // tm, Np // tn, Kp // tk)

    # --- pad to tile multiples (zero-padding K is exact for the matmul) -----
    if (Mp, Kp) != (M, K):
        x2 = jnp.pad(x2, ((0, Mp - M), (0, Kp - K)))
    w_p = weight_t
    if (Kp, Np) != (K, N):
        w_p = jnp.pad(weight_t, ((0, Kp - K), (0, Np - N)))
    b_p = bias.reshape(1, N)
    if Np != N:
        b_p = jnp.pad(b_p, ((0, 0), (0, Np - N)))

    # --- VMEM budget (generation-aware) --------------------------------------
    x_b = jnp.dtype(x2.dtype).itemsize
    w_b = jnp.dtype(w_p.dtype).itemsize
    o_b = jnp.dtype(out_dtype).itemsize
    use_scratch = out_dtype != jnp.float32
    working_set = 2 * (tm * tk * x_b + tk * tn * w_b
                       + tn * jnp.dtype(b_p.dtype).itemsize + tm * tn * o_b)
    if use_scratch:
        working_set += tm * tn * 4
    vmem_cap = _vmem_cap_bytes()
    vmem_limit = int(min(vmem_cap * 3 // 4, max(32 << 20, 2 * working_set)))

    kernel = _hidden_layer_kernel_scratch if use_scratch else _hidden_layer_kernel_f32
    scratch_shapes = [pltpu.VMEM((tm, tn), jnp.float32)] if use_scratch else []

    # bytes_accessed reflects actual re-streaming: W read (Mp//tm)x, x (Np//tn)x.
    bytes_accessed = ((Mp // tm) * Kp * Np * w_b
                      + (Np // tn) * Mp * Kp * x_b
                      + Mp * Np * o_b)

    out = pl.pallas_call(
        kernel,
        out_shape=jax.ShapeDtypeStruct((Mp, Np), out_dtype),
        grid_spec=pltpu.PrefetchScalarGridSpec(
            num_scalar_prefetch=0,
            grid=grid,
            in_specs=[
                pl.BlockSpec((tm, tk), lambda i, j, k: (i, k)),   # x tile
                pl.BlockSpec((tk, tn), lambda i, j, k: (k, j)),   # W.T tile
                pl.BlockSpec((1, tn), lambda i, j, k: (0, j)),    # bias tile
            ],
            out_specs=pl.BlockSpec((tm, tn), lambda i, j, k: (i, j)),
            scratch_shapes=scratch_shapes,
        ),
        compiler_params=pltpu.CompilerParams(
            dimension_semantics=("parallel", "parallel", "arbitrary"),
            vmem_limit_bytes=vmem_limit,
        ),
        cost_estimate=pl.CostEstimate(
            flops=2 * Mp * Np * Kp,
            transcendentals=0,
            bytes_accessed=int(bytes_accessed),
        ),
    )(x2, w_p, b_p)

    if (Mp, Np) != (M, N):
        out = out[:M, :N]
    return out.reshape(*orig_shape[:-1], N)


# ----------------------------------------------------------------------------
# Module
# ----------------------------------------------------------------------------
class HiddenLayer:
    """JAX/Pallas port of pc2/model.py::HiddenLayer forward (Linear + ReLU)."""

    def __init__(self, input_size, output_size, key=None, dtype=jnp.float32):
        if key is None:
            key = jax.random.PRNGKey(0)
        kw, kb = jax.random.split(key)
        bound = 1.0 / math.sqrt(input_size)
        # mirrors nn.Linear's default uniform(-1/sqrt(fan_in), 1/sqrt(fan_in))
        self.weight = jax.random.uniform(
            kw, (output_size, input_size), dtype, -bound, bound)
        self.bias = jax.random.uniform(
            kb, (output_size,), dtype, -bound, bound)
        # one-time layout plumbing at construction: (K, N) weight for the MXU
        self.weight_t = jnp.asarray(self.weight.T)

    def __call__(self, x):
        return hidden_layer_forward(x, self.weight_t, self.bias)


if __name__ == "__main__":
    key = jax.random.PRNGKey(0)
    kx, kp = jax.random.split(key)

    batch, input_size, output_size = 8, 256, 128
    x = jax.random.normal(kx, (batch, input_size), dtype=jnp.float32)

    layer = HiddenLayer(input_size, output_size, key=kp)
    y = layer(x)
    jax.block_until_ready(y)

    # pure-jnp reference mirroring the PyTorch forward
    ref = jnp.maximum(x @ layer.weight.T + layer.bias, 0.0)
    assert y.shape == ref.shape, (y.shape, ref.shape)
    err = float(jnp.max(jnp.abs(y - ref)))
    assert jnp.allclose(y, ref, atol=1e-4, rtol=1e-4), err

    print("KERNEL_OK")
</pallas_src>

<mosaic_0001>
module attributes {stable_mosaic.version = 11 : i64} {
  func.func @_hidden_layer_kernel_f32(%arg0: i32, %arg1: i32, %arg2: i32, %arg3: memref<8x256xf32, #tpu.memory_space<vmem>>, %arg4: memref<256x128xf32, #tpu.memory_space<vmem>>, %arg5: memref<1x128xf32, #tpu.memory_space<vmem>>, %arg6: memref<8x128xf32, #tpu.memory_space<vmem>>) attributes {dimension_semantics = [#tpu.dimension_semantics<parallel>, #tpu.dimension_semantics<parallel>, #tpu.dimension_semantics<arbitrary>], iteration_bounds = array<i64: 1, 1, 1>, scalar_prefetch = 0 : i64, scratch_operands = 0 : i64, tpu.core_type = #tpu.core_type<tc>, window_params = [{transform_indices = @transform_0, window_bounds = array<i64: 8, 256>}, {transform_indices = @transform_1, window_bounds = array<i64: 256, 128>}, {transform_indices = @transform_2, window_bounds = array<i64: 1, 128>}, {transform_indices = @transform_3, window_bounds = array<i64: 8, 128>}]} {
    %c0_i32 = arith.constant 0 : i32
    %0 = arith.cmpi eq, %arg2, %c0_i32 : i32
    %1 = arith.extui %0 : i1 to i32
    %c0_i32_0 = arith.constant 0 : i32
    %2 = arith.cmpi ne, %1, %c0_i32_0 : i32
    scf.if %2 {
      %cst_10 = arith.constant 0.000000e+00 : f32
      %12 = vector.broadcast %cst_10 : f32 to vector<8x128xf32>
      %c0_11 = arith.constant 0 : index
      %c0_12 = arith.constant 0 : index
      %13 = vector.load %arg6[%c0_11, %c0_12] : memref<8x128xf32, #tpu.memory_space<vmem>>, vector<8x128xf32>
      tpu.vector_store %arg6[%c0_11, %c0_12], %12 {strides = array<i32>} : memref<8x128xf32, #tpu.memory_space<vmem>>, vector<8x128xf32>,
    } else {
    }
    %c0 = arith.constant 0 : index
    %c0_1 = arith.constant 0 : index
    %3 = vector.load %arg6[%c0, %c0_1] : memref<8x128xf32, #tpu.memory_space<vmem>>, vector<8x128xf32>
    %c0_2 = arith.constant 0 : index
    %c0_3 = arith.constant 0 : index
    %4 = vector.load %arg3[%c0_2, %c0_3] : memref<8x256xf32, #tpu.memory_space<vmem>>, vector<8x256xf32>
    %c0_4 = arith.constant 0 : index
    %c0_5 = arith.constant 0 : index
    %5 = vector.load %arg4[%c0_4, %c0_5] : memref<256x128xf32, #tpu.memory_space<vmem>>, vector<256x128xf32>
    %cst = arith.constant dense<0.000000e+00> : vector<8x128xf32>
    %6 = tpu.matmul %4, %5, %cst {dimension_numbers = #tpu.dot_dimension_numbers<[1], [0], [0], [1], [0, 0, 1, 1], [], []>} : vector<8x256xf32>, vector<256x128xf32>, vector<8x128xf32> -> vector<8x128xf32>
    %7 = arith.addf %3, %6 : vector<8x128xf32>
    %c0_6 = arith.constant 0 : index
    %c0_7 = arith.constant 0 : index
    %8 = vector.load %arg6[%c0_6, %c0_7] : memref<8x128xf32, #tpu.memory_space<vmem>>, vector<8x128xf32>
    tpu.vector_store %arg6[%c0_6, %c0_7], %7 {strides = array<i32>} : memref<8x128xf32, #tpu.memory_space<vmem>>, vector<8x128xf32>,
    %c0_i32_8 = arith.constant 0 : i32
    %9 = arith.cmpi eq, %arg2, %c0_i32_8 : i32
    %10 = arith.extui %9 : i1 to i32
    %c0_i32_9 = arith.constant 0 : i32
    %11 = arith.cmpi ne, %10, %c0_i32_9 : i32
    scf.if %11 {
      %c0_10 = arith.constant 0 : index
      %c0_11 = arith.constant 0 : index
      %12 = vector.load %arg6[%c0_10, %c0_11] : memref<8x128xf32, #tpu.memory_space<vmem>>, vector<8x128xf32>
      %c0_12 = arith.constant 0 : index
      %c0_13 = arith.constant 0 : index
      %13 = vector.load %arg5[%c0_12, %c0_13] : memref<1x128xf32, #tpu.memory_space<vmem>>, vector<1x128xf32>
      %14 = vector.broadcast %13 : vector<1x128xf32> to vector<8x128xf32>
      %15 = arith.addf %12, %14 : vector<8x128xf32>
      %cst_14 = arith.constant 0.000000e+00 : f32
      %16 = vector.broadcast %cst_14 : f32 to vector<8x128xf32>
      %17 = arith.maximumf %15, %16 : vector<8x128xf32>
      %c0_15 = arith.constant 0 : index
      %c0_16 = arith.constant 0 : index
      %18 = vector.load %arg6[%c0_15, %c0_16] : memref<8x128xf32, #tpu.memory_space<vmem>>, vector<8x128xf32>
      tpu.vector_store %arg6[%c0_15, %c0_16], %17 {strides = array<i32>} : memref<8x128xf32, #tpu.memory_space<vmem>>, vector<8x128xf32>,
    } else {
    }
    return
  }
  func.func @transform_0(%arg0: i32, %arg1: i32, %arg2: i32) -> (i32, i32) {
    %c0_i32 = arith.constant 0 : i32
    return %arg0, %arg2 : i32, i32
  }
  func.func @transform_1(%arg0: i32, %arg1: i32, %arg2: i32) -> (i32, i32) {
    %c0_i32 = arith.constant 0 : i32
    return %arg2, %arg1 : i32, i32
  }
  func.func @transform_2(%arg0: i32, %arg1: i32, %arg2: i32) -> (i32, i32) {
    %c0_i32 = arith.constant 0 : i32
    %c0_i32_0 = arith.constant 0 : i32
    return %c0_i32, %arg1 : i32, i32
  }
  func.func @transform_3(%arg0: i32, %arg1: i32, %arg2: i32) -> (i32, i32) {
    %c0_i32 = arith.constant 0 : i32
    return %arg0, %arg1 : i32, i32
  }
}

</mosaic_0001>

<llo_original>
// kernel: tpu_custom_call.1
$region0: #{tpu_custom_call.1}
  #allocation0 [shape = 'u32[]', space=smem, size = 0x4, offset = 0x4, fixed_abs, tag = 'smem constant byte address 0x4 - core index']
  #allocation1 [shape = 'u32[144,128]{1,0:T(1,128)}', space=vmem, size = 0x12000, scoped, tag = 'internal scratch']
  %s0 = inlined_call_operand.hbm [shape: f32[8,256], index: 0, kind: input, shape index: {}]
  %s1 = inlined_call_operand.hbm [shape: f32[256,128], index: 1, kind: input, shape index: {}]
  %s2 = inlined_call_operand.vmem [shape: f32[1,128], index: 2, kind: input, shape index: {}]
  %s3 = inlined_call_operand.hbm [shape: f32[8,128], index: 3, kind: output, shape index: {}]
  %s4 = sld [smem:[#allocation0]]
  $region38: #{tpu_custom_call.1} parent=0
    _
  %s6 = ssub.s32 1, %s4
  %s7 = scalar_select 0, %s6, %s4
  $region1: #{tpu_custom_call.1} parent=0
    #allocation2 [shape = 'u8[8192]{0}', space=vmem, size = 0x2000, scoped, tag = 'input window, operand 0, single buffered']
    #allocation3 [shape = 's32[1]{0}', space=sflag, size = 0x4, scoped, tag = 'scoped memory for tpu_custom_call.1']
    #allocation4 [shape = 's32[1]{0}', space=sflag, size = 0x4, scoped, tag = 'scoped memory for tpu_custom_call.1']
    #allocation5 [shape = 'u8[131072]{0}', space=vmem, size = 0x20000, scoped, tag = 'input window, operand 1, single buffered']
    #allocation6 [shape = 's32[1]{0}', space=sflag, size = 0x4, scoped, tag = 'scoped memory for tpu_custom_call.1']
    #allocation7 [shape = 'u8[4096]{0}', space=vmem, size = 0x1000, scoped, tag = 'output window, operand 0, single buffered']
    %8 = vsyncpa [#allocation3], 0
    %9 = vsyncpa [#allocation6], 0
    %10 = vsyncpa [#allocation4], 0
    // Predicated region
    $region2: #{tpu_custom_call.1} parent=1 // pred_check
      _
    $region3: #{tpu_custom_call.1} parent=1 // pred_check_branch
      %12 = sbr.rel (0) target = $region5
    $region4: #{tpu_custom_call.1} parent=1 // pred_region
      %s14 = ssub.s32 256, 256
      %15 = vsyncadd [#allocation3], %s14
      %s17 = sshll.u32 [#allocation2], 4
      %s18 = int_to_ptr.vmem [resolvable:$true] %s17
      %20 = dma.hbm_to_vmem [thread:$0]  %s0, 256, %s18, [#allocation3]
    $region5: #{tpu_custom_call.1} parent=1 // pred_fallthru
      _
    // Predicated region
    $region6: #{tpu_custom_call.1} parent=1 // pred_check
      _
    $region7: #{tpu_custom_call.1} parent=1 // pred_check_branch
      %22 = sbr.rel (0) target = $region9
    $region8: #{tpu_custom_call.1} parent=1 // pred_region
      %s24 = ssub.s32 4096, 4096
      %25 = vsyncadd [#allocation6], %s24
      %s26 = sshll.u32 [#allocation5], 4
      %s27 = int_to_ptr.vmem [resolvable:$true] %s26
      %32 = dma.hbm_to_vmem [thread:$0]  %s1, 4096, %s27, [#allocation6], 128, 128, 8
    $region9: #{tpu_custom_call.1} parent=1 // pred_fallthru
      _
    // Predicated region
    $region10: #{tpu_custom_call.1} parent=1 // pred_check
      _
    $region11: #{tpu_custom_call.1} parent=1 // pred_check_branch
      %34 = sbr.rel (0) target = $region13
    $region12: #{tpu_custom_call.1} parent=1 // pred_region
      _
    $region13: #{tpu_custom_call.1} parent=1 // pred_fallthru
      _
    // Predicated region
    $region14: #{tpu_custom_call.1} parent=1 // pred_check
      _
    $region15: #{tpu_custom_call.1} parent=1 // pred_check_branch
      %36 = sbr.rel (0) target = $region17
    $region16: #{tpu_custom_call.1} parent=1 // pred_region
      %37 = dma.done [#allocation3], 256
    $region17: #{tpu_custom_call.1} parent=1 // pred_fallthru
      _
    // Predicated region
    $region18: #{tpu_custom_call.1} parent=1 // pred_check
      _
    $region19: #{tpu_custom_call.1} parent=1 // pred_check_branch
      %39 = sbr.rel (0) target = $region21
    $region20: #{tpu_custom_call.1} parent=1 // pred_region
      %40 = dma.done [#allocation6], 4096
    $region21: #{tpu_custom_call.1} parent=1 // pred_fallthru
      _
    %p41 = scmp.eq.s32.totalorder 0, 0
    // Predicated region
    $region22: #{tpu_custom_call.1} parent=1 // pred_check
      %p42 = pneg %p41
    $region23: #{tpu_custom_call.1} parent=1 // pred_check_branch
      %44 = sbr.rel (%p42) target = $region25
    $region24: #{tpu_custom_call.1} parent=1 // pred_region
      %45 = vst [vmem:[#allocation7] sm:$0xff] 0.0
    $region25: #{tpu_custom_call.1} parent=1 // pred_fallthru
      _
    %v46 = vld [vmem:[#allocation7] sm:$0xff]
    %v47 = vld [vmem:[#allocation2] sm:$0xff]
    %v48 = vld [vmem:[#allocation2 + $0x8] sm:$0xff]
    %v49 = vld [vmem:[#allocation5] sm:$0xff]
    %v50 = vld [vmem:[#allocation5 + $0x8] sm:$0xff]
    %v51 = vld [vmem:[#allocation5 + $0x10] sm:$0xff]
    %v52 = vld [vmem:[#allocation5 + $0x18] sm:$0xff]
    %v53 = vld [vmem:[#allocation5 + $0x20] sm:$0xff]
    %v54 = vld [vmem:[#allocation5 + $0x28] sm:$0xff]
    %v55 = vld [vmem:[#allocation5 + $0x30] sm:$0xff]
    %v56 = vld [vmem:[#allocation5 + $0x38] sm:$0xff]
    %v57 = vld [vmem:[#allocation5 + $0x40] sm:$0xff]
    %v58 = vld [vmem:[#allocation5 + $0x48] sm:$0xff]
    %v59 = vld [vmem:[#allocation5 + $0x50] sm:$0xff]
    %v60 = vld [vmem:[#allocation5 + $0x58] sm:$0xff]
    %v61 = vld [vmem:[#allocation5 + $0x60] sm:$0xff]
    %v62 = vld [vmem:[#allocation5 + $0x68] sm:$0xff]
    %v63 = vld [vmem:[#allocation5 + $0x70] sm:$0xff]
    %v64 = vld [vmem:[#allocation5 + $0x78] sm:$0xff]
    %v65 = vld [vmem:[#allocation5 + $0x80] sm:$0xff]
    %v66 = vld [vmem:[#allocation5 + $0x88] sm:$0xff]
    %v67 = vld [vmem:[#allocation5 + $0x90] sm:$0xff]
    %v68 = vld [vmem:[#allocation5 + $0x98] sm:$0xff]
    %v69 = vld [vmem:[#allocation5 + $0xa0] sm:$0xff]
    %v70 = vld [vmem:[#allocation5 + $0xa8] sm:$0xff]
    %v71 = vld [vmem:[#allocation5 + $0xb0] sm:$0xff]
    %v72 = vld [vmem:[#allocation5 + $0xb8] sm:$0xff]
    %v73 = vld [vmem:[#allocation5 + $0xc0] sm:$0xff]
    %v74 = vld [vmem:[#allocation5 + $0xc8] sm:$0xff]
    %v75 = vld [vmem:[#allocation5 + $0xd0] sm:$0xff]
    %v76 = vld [vmem:[#allocation5 + $0xd8] sm:$0xff]
    %v77 = vld [vmem:[#allocation5 + $0xe0] sm:$0xff]
    %v78 = vld [vmem:[#allocation5 + $0xe8] sm:$0xff]
    %v79 = vld [vmem:[#allocation5 + $0xf0] sm:$0xff]
    %v80 = vld [vmem:[#allocation5 + $0xf8] sm:$0xff]
    %81 = vmatprep.subr.mxu0 0.0
    %82 = vmatpush1.msra.mxu0 %v49
    %83 = vmatprep.subr.mxu0 0.0
    %84 = vmatpush1.msra.mxu0 %v50
    %85 = vmatprep.subr.mxu0 0.0
    %86 = vmatpush1.msra.mxu0 %v51
    %87 = vmatprep.subr.mxu0 0.0
    %88 = vmatpush1.msra.mxu0 %v52
    %89 = vmatprep.subr.mxu0 0.0
    %90 = vmatpush1.msra.mxu0 %v53
    %91 = vmatprep.subr.mxu0 0.0
    %92 = vmatpush1.msra.mxu0 %v54
    %93 = vmatprep.subr.mxu0 0.0
    %94 = vmatpush1.msra.mxu0 %v55
    %95 = vmatprep.subr.mxu0 0.0
    %96 = vmatpush1.msra.mxu0 %v56
    %97 = vmatprep.subr.mxu0 0.0
    %98 = vmatpush1.msra.mxu0 %v57
    %99 = vmatprep.subr.mxu0 0.0
    %100 = vmatpush1.msra.mxu0 %v58
    %101 = vmatprep.subr.mxu0 0.0
    %102 = vmatpush1.msra.mxu0 %v59
    %103 = vmatprep.subr.mxu0 0.0
    %104 = vmatpush1.msra.mxu0 %v60
    %105 = vmatprep.subr.mxu0 0.0
    %106 = vmatpush1.msra.mxu0 %v61
    %107 = vmatprep.subr.mxu0 0.0
    %108 = vmatpush1.msra.mxu0 %v62
    %109 = vmatprep.subr.mxu0 0.0
    %110 = vmatpush1.msra.mxu0 %v63
    %111 = vmatprep.subr.mxu0 0.0
    %112 = vmatpush1.msra.mxu0 %v64
    %113 = vmatprep.subr.mxu0 0.0
    %114 = vmatpush1.msra.mxu0 %v65
    %115 = vmatprep.subr.mxu0 0.0
    %116 = vmatpush1.msra.mxu0 %v66
    %117 = vmatprep.subr.mxu0 0.0
    %118 = vmatpush1.msra.mxu0 %v67
    %119 = vmatprep.subr.mxu0 0.0
    %120 = vmatpush1.msra.mxu0 %v68
    %121 = vmatprep.subr.mxu0 0.0
    %122 = vmatpush1.msra.mxu0 %v69
    %123 = vmatprep.subr.mxu0 0.0
    %124 = vmatpush1.msra.mxu0 %v70
    %125 = vmatprep.subr.mxu0 0.0
    %126 = vmatpush1.msra.mxu0 %v71
    %127 = vmatprep.subr.mxu0 0.0
    %128 = vmatpush1.msra.mxu0 %v72
    %129 = vmatprep.subr.mxu0 0.0
    %130 = vmatpush1.msra.mxu0 %v73
    %131 = vmatprep.subr.mxu0 0.0
    %132 = vmatpush1.msra.mxu0 %v74
    %133 = vmatprep.subr.mxu0 0.0
    %134 = vmatpush1.msra.mxu0 %v75
    %135 = vmatprep.subr.mxu0 0.0
    %136 = vmatpush1.msra.mxu0 %v76
    %137 = vmatprep.subr.mxu0 0.0
    %138 = vmatpush1.msra.mxu0 %v77
    %139 = vmatprep.subr.mxu0 0.0
    %140 = vmatpush1.msra.mxu0 %v78
    %141 = vmatprep.subr.mxu0 0.0
    %142 = vmatpush1.msra.mxu0 %v79
    %143 = vmatprep.subr.mxu0 0.0
    %144 = vmatpush1.msra.mxu0 %v80
    %145 = vmatprep.mubr.f32.mxu0 %v48
    %146 = vmatmul.mubr.f32.gmra.mrb[0].mxu0 %v47
    %v147 = vpop.f32.mrb[0].mxu0
    %v148 = vadd.f32 0.0, %v147
    %v149 = vpop.f32.mrb[0].mxu0
    %150 = vdwg.mxu0
    %v151 = vadd.f32 %v46, %v148
    %152 = vst [vmem:[#allocation7] sm:$0xff] %v151
    // Predicated region
    $region26: #{tpu_custom_call.1} parent=1 // pred_check
      %p153 = pneg %p41
    $region27: #{tpu_custom_call.1} parent=1 // pred_check_branch
      %155 = sbr.rel (%p153) target = $region29
    $region28: #{tpu_custom_call.1} parent=1 // pred_region
      %v156 = vld [vmem:[#allocation7] sm:$0xff]
      %v157 = vld [vmem:[%s2] sm:$0x1]
      %v159 = vlaneseq
      %v160 = vshrl.u32 %v159, 7
      %v161 = vsub.s32 0, %v160
      %v162 = vrot.slane %v157, %v161
      %v164 = vadd.f32 %v156, %v162
      %v165 = vmax.f32 %v164, 0.0
      %166 = vst [vmem:[#allocation7] sm:$0xff] %v165
    $region29: #{tpu_custom_call.1} parent=1 // pred_fallthru
      _
    // Predicated region
    $region30: #{tpu_custom_call.1} parent=1 // pred_check
      _
    $region31: #{tpu_custom_call.1} parent=1 // pred_check_branch
      %168 = sbr.rel (0) target = $region33
    $region32: #{tpu_custom_call.1} parent=1 // pred_region
      %s170 = ssub.s32 128, 128
      %171 = vsyncadd [#allocation4], %s170
      %s173 = sshll.u32 [#allocation7], 4
      %s174 = int_to_ptr.vmem [resolvable:$true] %s173
      %176 = dma.vmem_to_hbm [thread:$0]  %s174, 128, %s3, [#allocation4]
    $region33: #{tpu_custom_call.1} parent=1 // pred_fallthru
      _
    // Predicated region
    $region34: #{tpu_custom_call.1} parent=1 // pred_check
      _
    $region35: #{tpu_custom_call.1} parent=1 // pred_check_branch
      %178 = sbr.rel (0) target = $region37
    $region36: #{tpu_custom_call.1} parent=1 // pred_region
      %179 = dma.done [#allocation4], 128
    $region37: #{tpu_custom_call.1} parent=1 // pred_fallthru
      _
    %180 = vsyncpa [#allocation3], 1
    %181 = vsyncpa [#allocation6], 1
    %182 = vsyncpa [#allocation4], 1

</llo_original>
